<compile_context>
chip_gen: v5e
topology: v5e:2x2
jax: 0.10.0
libtpu: 0.0.40
codegen_flags: <defaults>
</compile_context>

<pallas_src>
import functools
import math

import jax
import jax.numpy as jnp
from jax.experimental import pallas as pl
from jax.experimental.pallas import tpu as pltpu

TANH_CLIPPING = 10.0
MASK_FILL = -10000.0


def _round_up(x, m):
    return ((x + m - 1) // m) * m


def _scores(q_ref, h_ref, wq_ref, wk_ref, norm_factor):
    """Both projections (flattened-batch MXU matmuls) + batched QK^T + tanh clip."""
    Bt, Nq, D = q_ref.shape
    T = h_ref.shape[1]
    Dk = wq_ref.shape[-1]

    # Flatten batch into the matmul M dimension; keep native dtype operands,
    # accumulate in f32 on the MXU.
    q2 = q_ref[...].reshape(Bt * Nq, D)
    h2 = h_ref[...].reshape(Bt * T, D)
    Q = jnp.dot(q2, wq_ref[...], preferred_element_type=jnp.float32)   # (Bt*Nq, Dk)
    K = jnp.dot(h2, wk_ref[...], preferred_element_type=jnp.float32)   # (Bt*T,  Dk)
    Q = Q.reshape(Bt, Nq, Dk)
    K = K.reshape(Bt, T, Dk)

    # Batched Q @ K^T (contract Dk), f32 accumulation on the MXU.
    U = jnp.einsum("bqd,btd->bqt", Q, K, preferred_element_type=jnp.float32)
    U = U * jnp.float32(norm_factor)
    return jnp.float32(TANH_CLIPPING) * jnp.tanh(U)                     # (Bt, Nq, T)


def _finish(U, o_ref):
    """Pad score lanes to T_pad with -inf, log-softmax, lane-dense store."""
    Bt, Nq, T = U.shape
    T_pad = o_ref.shape[-1]
    if T_pad != T:
        pad = jnp.full((Bt, Nq, T_pad - T), -jnp.inf, dtype=jnp.float32)
        U = jnp.concatenate([U, pad], axis=-1)
    m = jnp.max(U, axis=-1, keepdims=True)
    lse = jnp.log(jnp.sum(jnp.exp(U - m), axis=-1, keepdims=True)) + m
    o_ref[...] = (U - lse).astype(o_ref.dtype)


def _attn_kernel(q_ref, h_ref, wq_ref, wk_ref, o_ref, *, norm_factor):
    U = _scores(q_ref, h_ref, wq_ref, wk_ref, norm_factor)
    _finish(U, o_ref)


def _attn_kernel_masked(q_ref, h_ref, wq_ref, wk_ref, m_ref, o_ref, *, norm_factor):
    U = _scores(q_ref, h_ref, wq_ref, wk_ref, norm_factor)
    mask = m_ref[...]                                     # (Bt, 1, T), broadcast over Nq
    U = jnp.where(mask != 0, jnp.float32(MASK_FILL), U)
    _finish(U, o_ref)


def _pick_bt(B, Nq, T, T_pad, D, Dk, itemsize):
    """Batch-tile size: fill MXU rows, keep >=2 grid steps, stay small in VMEM."""
    # ~256 flattened rows per projection matmul (v6e/v7x MXU pass; >=128 for v5e).
    target = max(1, 256 // max(Nq, T, 1))
    target = min(target, B)
    if B >= 2:
        target = min(target, max(1, B // 2))   # grid length >= 2 -> both v7x TCs busy

    def step_bytes(bt):
        ins = bt * (Nq + T) * D * itemsize + bt * T * 4          # q, h, mask blocks
        outs = bt * Nq * T_pad * itemsize                        # output block
        acc = bt * Nq * T_pad * 4 + bt * (Nq + T) * Dk * 4       # f32 scores + Q/K
        wts = 2 * D * Dk * itemsize                              # resident weights
        return 2 * (ins + outs + wts) + acc                      # 2x double-buffering

    bt = max(1, target)
    # Keep bt a divisor of B (no ragged edge blocks) and within a conservative
    # per-step VMEM budget (well under v7x's 64 MiB physical / 32 MiB scoped).
    while bt > 1 and (B % bt != 0 or step_bytes(bt) > (8 << 20)):
        bt -= 1
    return bt, step_bytes(bt)


@jax.jit
def single_head_attention(q, h, w_query, w_key, mask=None):
    """Pallas equivalent of SingleHeadAttention(embedding_dim).forward(q, h, mask).

    q:       (B, Nq, D)
    h:       (B, T,  D)   (pass q again, or None, for the h=None case)
    w_query: (D, Dk)
    w_key:   (D, Dk)
    mask:    (B, T) nonzero = "attention not possible", or None
    returns: (B, Nq, T) log-softmax attention (log-probabilities)
    """
    if h is None:
        h = q
    B, T, D = h.shape
    Nq = q.shape[1]
    Dk = w_query.shape[-1]
    norm_factor = 1.0 / math.sqrt(Dk)

    T_pad = _round_up(T, 128)                 # lane-dense output store
    Bt, est_bytes = _pick_bt(B, Nq, T, T_pad, D, Dk, jnp.dtype(q.dtype).itemsize)
    grid = (B // Bt,)
    vmem_limit = int(min(32 << 20, max(16 << 20, 4 * est_bytes)))

    in_specs = [
        pl.BlockSpec((Bt, Nq, D), lambda b: (b, 0, 0)),   # q: Bt batch rows
        pl.BlockSpec((Bt, T, D), lambda b: (b, 0, 0)),    # h: Bt batch rows
        pl.BlockSpec((D, Dk), lambda b: (0, 0)),          # w_query (tiny, resident)
        pl.BlockSpec((D, Dk), lambda b: (0, 0)),          # w_key
    ]
    args = [q, h, w_query, w_key]

    if mask is not None:
        if mask.dtype == jnp.bool_:
            mask = mask.astype(jnp.int32)
        mask3 = mask[:, None, :]              # unit-dim view only, no cast/copy
        in_specs.append(pl.BlockSpec((Bt, 1, T), lambda b: (b, 0, 0)))
        args.append(mask3)
        kernel = functools.partial(_attn_kernel_masked, norm_factor=norm_factor)
    else:
        kernel = functools.partial(_attn_kernel, norm_factor=norm_factor)

    out_padded = pl.pallas_call(
        kernel,
        out_shape=jax.ShapeDtypeStruct((B, Nq, T_pad), q.dtype),
        grid_spec=pltpu.PrefetchScalarGridSpec(
            num_scalar_prefetch=0,
            grid=grid,
            in_specs=in_specs,
            out_specs=pl.BlockSpec((Bt, Nq, T_pad), lambda b: (b, 0, 0)),
        ),
        compiler_params=pltpu.CompilerParams(
            # Batch-tile axis is independent work -> sharded across the two
            # v7x TensorCores; neutral on single-TC v5e/v6e.
            dimension_semantics=("parallel",),
            vmem_limit_bytes=vmem_limit,
        ),
    )(*args)

    if T_pad != T:
        out_padded = out_padded[..., :T]      # drop the -inf lane padding
    return out_padded


def _reference(q, h, w_query, w_key, mask=None):
    B, T, D = h.shape
    Nq = q.shape[1]
    Dk = w_query.shape[-1]
    Q = (q.reshape(-1, D) @ w_query).reshape(B, Nq, Dk)
    K = (h.reshape(-1, D) @ w_key).reshape(B, T, Dk)
    U = (1.0 / math.sqrt(Dk)) * jnp.einsum("bqd,btd->bqt", Q, K)
    U = TANH_CLIPPING * jnp.tanh(U)
    if mask is not None:
        U = jnp.where(mask[:, None, :].astype(bool), MASK_FILL, U)
    return jax.nn.log_softmax(U, axis=-1)


if __name__ == "__main__":
    key = jax.random.PRNGKey(0)
    batch, n_query, graph_size, embedding_dim = 8, 8, 16, 32
    k_q, k_h, k_wq, k_wk, k_m = jax.random.split(key, 5)

    q = jax.random.normal(k_q, (batch, n_query, embedding_dim), dtype=jnp.float32)
    h = jax.random.normal(k_h, (batch, graph_size, embedding_dim), dtype=jnp.float32)

    # init_parameters(): uniform(-stdv, stdv), stdv = 1/sqrt(key_dim)
    stdv = 1.0 / math.sqrt(embedding_dim)
    w_query = jax.random.uniform(k_wq, (embedding_dim, embedding_dim),
                                 minval=-stdv, maxval=stdv, dtype=jnp.float32)
    w_key = jax.random.uniform(k_wk, (embedding_dim, embedding_dim),
                               minval=-stdv, maxval=stdv, dtype=jnp.float32)

    # Mask: nonzero = attention not possible (negative adjacency), shape (B, T).
    mask = (jax.random.uniform(k_m, (batch, graph_size)) < 0.3).astype(jnp.int32)

    # Unmasked path (h defaults to q in the module when h is None).
    out_self = jax.block_until_ready(single_head_attention(q, None, w_query, w_key))
    ref_self = _reference(q, q, w_query, w_key)
    assert out_self.shape == (batch, n_query, n_query)
    assert jnp.allclose(out_self, ref_self, atol=1e-4, rtol=1e-4), "self-attn mismatch"

    # Masked cross-attention path.
    out = jax.block_until_ready(single_head_attention(q, h, w_query, w_key, mask))
    ref = _reference(q, h, w_query, w_key, mask)
    assert out.shape == (batch, n_query, graph_size)
    assert jnp.allclose(out, ref, atol=1e-4, rtol=1e-4), "masked attn mismatch"

    print("KERNEL_OK")
</pallas_src>

<mosaic_0001>
module attributes {stable_mosaic.version = 11 : i64} {
  func.func @_attn_kernel(%arg0: i32, %arg1: memref<4x8x32xf32, #tpu.memory_space<vmem>>, %arg2: memref<4x8x32xf32, #tpu.memory_space<vmem>>, %arg3: memref<32x32xf32, #tpu.memory_space<vmem>>, %arg4: memref<32x32xf32, #tpu.memory_space<vmem>>, %arg5: memref<4x8x128xf32, #tpu.memory_space<vmem>>) attributes {dimension_semantics = [#tpu.dimension_semantics<parallel>], iteration_bounds = array<i64: 2>, scalar_prefetch = 0 : i64, scratch_operands = 0 : i64, tpu.core_type = #tpu.core_type<tc>, window_params = [{transform_indices = @transform_0, window_bounds = array<i64: 4, 8, 32>}, {transform_indices = @transform_1, window_bounds = array<i64: 4, 8, 32>}, {pipeline_mode = #tpu.pipeline_mode<synchronous>, transform_indices = @transform_2, window_bounds = array<i64: 32, 32>}, {pipeline_mode = #tpu.pipeline_mode<synchronous>, transform_indices = @transform_3, window_bounds = array<i64: 32, 32>}, {transform_indices = @transform_4, window_bounds = array<i64: 4, 8, 128>}]} {
    %c0 = arith.constant 0 : index
    %c0_0 = arith.constant 0 : index
    %c0_1 = arith.constant 0 : index
    %0 = vector.load %arg1[%c0, %c0_0, %c0_1] : memref<4x8x32xf32, #tpu.memory_space<vmem>>, vector<4x8x32xf32>
    %1 = vector.shape_cast %0 : vector<4x8x32xf32> to vector<32x32xf32>
    %c0_2 = arith.constant 0 : index
    %c0_3 = arith.constant 0 : index
    %c0_4 = arith.constant 0 : index
    %2 = vector.load %arg2[%c0_2, %c0_3, %c0_4] : memref<4x8x32xf32, #tpu.memory_space<vmem>>, vector<4x8x32xf32>
    %3 = vector.shape_cast %2 : vector<4x8x32xf32> to vector<32x32xf32>
    %c0_5 = arith.constant 0 : index
    %c0_6 = arith.constant 0 : index
    %4 = vector.load %arg3[%c0_5, %c0_6] : memref<32x32xf32, #tpu.memory_space<vmem>>, vector<32x32xf32>
    %cst = arith.constant dense<0.000000e+00> : vector<32x32xf32>
    %5 = tpu.matmul %1, %4, %cst {dimension_numbers = #tpu.dot_dimension_numbers<[1], [0], [0], [1], [0, 0, 1, 1], [], []>} : vector<32x32xf32>, vector<32x32xf32>, vector<32x32xf32> -> vector<32x32xf32>
    %c0_7 = arith.constant 0 : index
    %c0_8 = arith.constant 0 : index
    %6 = vector.load %arg4[%c0_7, %c0_8] : memref<32x32xf32, #tpu.memory_space<vmem>>, vector<32x32xf32>
    %cst_9 = arith.constant dense<0.000000e+00> : vector<32x32xf32>
    %7 = tpu.matmul %3, %6, %cst_9 {dimension_numbers = #tpu.dot_dimension_numbers<[1], [0], [0], [1], [0, 0, 1, 1], [], []>} : vector<32x32xf32>, vector<32x32xf32>, vector<32x32xf32> -> vector<32x32xf32>
    %8 = vector.shape_cast %5 : vector<32x32xf32> to vector<4x8x32xf32>
    %9 = vector.shape_cast %7 : vector<32x32xf32> to vector<4x8x32xf32>
    "tpu.trace_start"() <{level = 10 : i32, message = "bqd,btd->bqt"}> : () -> ()
    %cst_10 = arith.constant dense<0.000000e+00> : vector<4x8x8xf32>
    %10 = tpu.matmul %8, %9, %cst_10 {dimension_numbers = #tpu.dot_dimension_numbers<[2], [2], [1], [1], [0, 0, 0, 1, 1, 1], [0], [0]>} : vector<4x8x32xf32>, vector<4x8x32xf32>, vector<4x8x8xf32> -> vector<4x8x8xf32>
    "tpu.trace_stop"() : () -> ()
    %cst_11 = arith.constant 0.176776692 : f32
    %11 = vector.broadcast %cst_11 : f32 to vector<4x8x8xf32>
    %12 = arith.mulf %10, %11 : vector<4x8x8xf32>
    %13 = math.tanh %12 : vector<4x8x8xf32>
    %cst_12 = arith.constant 1.000000e+01 : f32
    %14 = vector.broadcast %cst_12 : f32 to vector<4x8x8xf32>
    %15 = arith.mulf %14, %13 : vector<4x8x8xf32>
    %cst_13 = arith.constant 0xFF800000 : f32
    %16 = vector.broadcast %cst_13 : f32 to vector<4x8x120xf32>
    %17 = tpu.concatenate %15, %16 in 2 : vector<4x8x8xf32>, vector<4x8x120xf32> -> vector<4x8x128xf32>
    %cst_14 = arith.constant dense<0xFF800000> : vector<4x8xf32>
    %18 = vector.multi_reduction <maximumf>, %17, %cst_14 [2] : vector<4x8x128xf32> to vector<4x8xf32>
    %19 = vector.shape_cast %18 : vector<4x8xf32> to vector<4x8x1xf32>
    %20 = vector.broadcast %19 : vector<4x8x1xf32> to vector<4x8x128xf32>
    %21 = arith.subf %17, %20 : vector<4x8x128xf32>
    %22 = math.exp %21 : vector<4x8x128xf32>
    %cst_15 = arith.constant dense<0.000000e+00> : vector<4x8xf32>
    %23 = vector.multi_reduction <add>, %22, %cst_15 [2] : vector<4x8x128xf32> to vector<4x8xf32>
    %24 = vector.shape_cast %23 : vector<4x8xf32> to vector<4x8x1xf32>
    %25 = math.log %24 : vector<4x8x1xf32>
    %26 = arith.addf %25, %19 : vector<4x8x1xf32>
    %27 = vector.broadcast %26 : vector<4x8x1xf32> to vector<4x8x128xf32>
    %28 = arith.subf %17, %27 : vector<4x8x128xf32>
    %c0_16 = arith.constant 0 : index
    %c0_17 = arith.constant 0 : index
    %c0_18 = arith.constant 0 : index
    %29 = vector.load %arg5[%c0_16, %c0_17, %c0_18] : memref<4x8x128xf32, #tpu.memory_space<vmem>>, vector<4x8x128xf32>
    tpu.vector_store %arg5[%c0_16, %c0_17, %c0_18], %28 {strides = array<i32>} : memref<4x8x128xf32, #tpu.memory_space<vmem>>, vector<4x8x128xf32>,
    return
  }
  func.func @transform_0(%arg0: i32) -> (i32, i32, i32) {
    %c0_i32 = arith.constant 0 : i32
    %c0_i32_0 = arith.constant 0 : i32
    %c0_i32_1 = arith.constant 0 : i32
    return %arg0, %c0_i32, %c0_i32_0 : i32, i32, i32
  }
  func.func @transform_1(%arg0: i32) -> (i32, i32, i32) {
    %c0_i32 = arith.constant 0 : i32
    %c0_i32_0 = arith.constant 0 : i32
    %c0_i32_1 = arith.constant 0 : i32
    return %arg0, %c0_i32, %c0_i32_0 : i32, i32, i32
  }
  func.func @transform_2(%arg0: i32) -> (i32, i32) {
    %c0_i32 = arith.constant 0 : i32
    %c0_i32_0 = arith.constant 0 : i32
    %c0_i32_1 = arith.constant 0 : i32
    return %c0_i32, %c0_i32_0 : i32, i32
  }
  func.func @transform_3(%arg0: i32) -> (i32, i32) {
    %c0_i32 = arith.constant 0 : i32
    %c0_i32_0 = arith.constant 0 : i32
    %c0_i32_1 = arith.constant 0 : i32
    return %c0_i32, %c0_i32_0 : i32, i32
  }
  func.func @transform_4(%arg0: i32) -> (i32, i32, i32) {
    %c0_i32 = arith.constant 0 : i32
    %c0_i32_0 = arith.constant 0 : i32
    %c0_i32_1 = arith.constant 0 : i32
    return %arg0, %c0_i32, %c0_i32_0 : i32, i32, i32
  }
}

</mosaic_0001>

<llo_original>
// kernel: single_head_attention.1
$region0: #{single_head_attention.1}
  #allocation0 [shape = 'u32[]', space=smem, size = 0x4, offset = 0x4, fixed_abs, tag = 'smem constant byte address 0x4 - core index']
  #allocation1 [shape = 'u32[72,128]{1,0:T(1,128)}', space=vmem, size = 0x9000, scoped, tag = 'internal scratch']
  %s0 = inlined_call_operand.hbm [shape: f32[8,8,32], index: 0, kind: input, shape index: {}, may-alias: {0,1}]
  %s1 = inlined_call_operand.hbm [shape: f32[8,8,32], index: 1, kind: input, shape index: {}, may-alias: {0,1}]
  %s2 = inlined_call_operand.hbm [shape: f32[32,32], index: 2, kind: input, shape index: {}]
  %s3 = inlined_call_operand.hbm [shape: f32[32,32], index: 3, kind: input, shape index: {}]
  %s4 = inlined_call_operand.hbm [shape: f32[8,8,128], index: 4, kind: output, shape index: {}]
  %s5 = sld [smem:[#allocation0]]
  $region65: #{single_head_attention.1} parent=0
    _
  %s7 = ssub.s32 1, %s5
  %s8 = scalar_select 0, %s7, %s5
  $region1: #{single_head_attention.1} parent=0
    #allocation2 [shape = 'u8[32768]{0}', space=vmem, size = 0x8000, scoped, tag = 'input window, operand 0']
    #allocation3 [shape = 's32[2]{0}', space=sflag, size = 0x8, scoped, tag = 'scoped memory for single_head_attention.1']
    #allocation4 [shape = 's32[2]{0}', space=sflag, size = 0x8, scoped, tag = 'scoped memory for single_head_attention.1']
    #allocation5 [shape = 'u8[32768]{0}', space=vmem, size = 0x8000, scoped, tag = 'input window, operand 1']
    #allocation6 [shape = 's32[2]{0}', space=sflag, size = 0x8, scoped, tag = 'scoped memory for single_head_attention.1']
    #allocation7 [shape = 'u8[16384]{0}', space=vmem, size = 0x4000, scoped, tag = 'input window, operand 2, single buffered']
    #allocation8 [shape = 'u8[16384]{0}', space=vmem, size = 0x4000, scoped, tag = 'input window, operand 3, single buffered']
    #allocation9 [shape = 's32[1]{0}', space=sflag, size = 0x4, scoped, tag = 'scoped memory for single_head_attention.1']
    #allocation10 [shape = 'u8[32768]{0}', space=vmem, size = 0x8000, scoped, tag = 'output window, operand 0']
    %9 = vsyncpa [#allocation3], 0
    %s10 = scalar_lea.sflag [#allocation3], 1
    %11 = vsyncpa %s10, 0
    %12 = vsyncpa [#allocation6], 0
    %s13 = scalar_lea.sflag [#allocation6], 1
    %14 = vsyncpa %s13, 0
    %15 = vsyncpa [#allocation9], 0
    %16 = vsyncpa [#allocation4], 0
    %s17 = scalar_lea.sflag [#allocation4], 1
    %18 = vsyncpa %s17, 0
    loop: start=0, step=1, limit=4
    $region2: #{single_head_attention.1} parent=1 // loop_pre_header
      _
    $region3: #{single_head_attention.1} parent=1 // loop_header
      %s20 = sphi 0, %s24
      %p21 = scmp.ge.s32.totalorder %s20, 4
      %s30 = sphi 0, %s32
      %s33 = sphi 0, %s30
      %s34 = sphi 0, %s33
      %s50 = sphi 0, %s34
      %s56 = sphi 0, %s58
      %s59 = sphi 0, %s56
      %s60 = sphi 0, %s59
      %s76 = sphi 0, %s60
      %s80 = sphi 0, %s80
      %s82 = sphi 0, %s80
      %s83 = sphi 0, %s82
      %s97 = sphi 0, %s83
      %s101 = sphi 0, %s101
      %s103 = sphi 0, %s101
      %s104 = sphi 0, %s103
      %s118 = sphi 0, %s104
      %s124 = sphi 0, %s126
      %s127 = sphi 0, %s124
      %s128 = sphi 0, %s127
      %s144 = sphi 0, %s128
    $region4: #{single_head_attention.1} parent=1 // loop_header_branch
      %23 = sbr.rel (%p21) target = $region8
    $region5: #{single_head_attention.1} parent=1 // loop_body
      %s25 = ssub.s32 %s20, 1
      %s26 = ssub.s32 %s20, 2
      %s27 = sadd.s32 %s20, 1
      %s28 = ssub.s32 %s20, %s27
      %p29 = scmp.eq.s32.totalorder %s28, 0
      %s31 = sadd.s32 %s30, 1
      %s32 = scalar_select %p29, %s30, %s31
      %p35 = pneg %p29
      %p36 = scmp.eq.s32.totalorder %s20, 1
      %p37 = por %p35, %p36
      %p38 = scmp.ne.s32.totalorder %s30, %s33
      %p39 = scmp.eq.s32.totalorder %s20, 0
      %p40 = por %p38, %p39
      %p41 = scmp.ne.s32.totalorder %s30, %s33
      %p42 = scmp.eq.s32.totalorder %s25, 1
      %p43 = por %p41, %p42
      %p44 = scmp.ne.s32.totalorder %s33, %s34
      %p45 = scmp.eq.s32.totalorder %s25, 0
      %p46 = por %p44, %p45
      %p47 = scmp.ne.s32.totalorder %s33, %s34
      %p48 = scmp.eq.s32.totalorder %s26, 1
      %p49 = por %p47, %p48
      %p51 = scmp.ne.s32.totalorder %s34, %s50
      %p52 = scmp.eq.s32.totalorder %s26, 0
      %p53 = por %p51, %p52
      %s54 = ssub.s32 %s20, %s27
      %p55 = scmp.eq.s32.totalorder %s54, 0
      %s57 = sadd.s32 %s56, 1
      %s58 = scalar_select %p55, %s56, %s57
      %p61 = pneg %p55
      %p62 = scmp.eq.s32.totalorder %s20, 1
      %p63 = por %p61, %p62
      %p64 = scmp.ne.s32.totalorder %s56, %s59
      %p65 = scmp.eq.s32.totalorder %s20, 0
      %p66 = por %p64, %p65
      %p67 = scmp.ne.s32.totalorder %s56, %s59
      %p68 = scmp.eq.s32.totalorder %s25, 1
      %p69 = por %p67, %p68
      %p70 = scmp.ne.s32.totalorder %s59, %s60
      %p71 = scmp.eq.s32.totalorder %s25, 0
      %p72 = por %p70, %p71
      %p73 = scmp.ne.s32.totalorder %s59, %s60
      %p74 = scmp.eq.s32.totalorder %s26, 1
      %p75 = por %p73, %p74
      %p77 = scmp.ne.s32.totalorder %s60, %s76
      %p78 = scmp.eq.s32.totalorder %s26, 0
      %p79 = por %p77, %p78
      %s81 = sadd.s32 %s80, 1
      %p84 = scmp.eq.s32.totalorder %s20, 1
      %p85 = scmp.ne.s32.totalorder %s80, %s82
      %p86 = scmp.eq.s32.totalorder %s20, 0
      %p87 = por %p85, %p86
      %p88 = scmp.ne.s32.totalorder %s80, %s82
      %p89 = scmp.eq.s32.totalorder %s25, 1
      %p90 = por %p88, %p89
      %p91 = scmp.ne.s32.totalorder %s82, %s83
      %p92 = scmp.eq.s32.totalorder %s25, 0
      %p93 = por %p91, %p92
      %p94 = scmp.ne.s32.totalorder %s82, %s83
      %p95 = scmp.eq.s32.totalorder %s26, 1
      %p96 = por %p94, %p95
      %p98 = scmp.ne.s32.totalorder %s83, %s97
      %p99 = scmp.eq.s32.totalorder %s26, 0
      %p100 = por %p98, %p99
      %s102 = sadd.s32 %s101, 1
      %p105 = scmp.eq.s32.totalorder %s20, 1
      %p106 = scmp.ne.s32.totalorder %s101, %s103
      %p107 = scmp.eq.s32.totalorder %s20, 0
      %p108 = por %p106, %p107
      %p109 = scmp.ne.s32.totalorder %s101, %s103
      %p110 = scmp.eq.s32.totalorder %s25, 1
      %p111 = por %p109, %p110
      %p112 = scmp.ne.s32.totalorder %s103, %s104
      %p113 = scmp.eq.s32.totalorder %s25, 0
      %p114 = por %p112, %p113
      %p115 = scmp.ne.s32.totalorder %s103, %s104
      %p116 = scmp.eq.s32.totalorder %s26, 1
      %p117 = por %p115, %p116
      %p119 = scmp.ne.s32.totalorder %s104, %s118
      %p120 = scmp.eq.s32.totalorder %s26, 0
      %p121 = por %p119, %p120
      %s122 = ssub.s32 %s20, %s27
      %p123 = scmp.eq.s32.totalorder %s122, 0
      %s125 = sadd.s32 %s124, 1
      %s126 = scalar_select %p123, %s124, %s125
      %p129 = pneg %p123
      %p130 = scmp.eq.s32.totalorder %s20, 1
      %p131 = por %p129, %p130
      %p132 = scmp.ne.s32.totalorder %s124, %s127
      %p133 = scmp.eq.s32.totalorder %s20, 0
      %p134 = por %p132, %p133
      %p135 = scmp.ne.s32.totalorder %s124, %s127
      %p136 = scmp.eq.s32.totalorder %s25, 1
      %p137 = por %p135, %p136
      %p138 = scmp.ne.s32.totalorder %s127, %s128
      %p139 = scmp.eq.s32.totalorder %s25, 0
      %p140 = por %p138, %p139
      %p141 = scmp.ne.s32.totalorder %s127, %s128
      %p142 = scmp.eq.s32.totalorder %s26, 1
      %p143 = por %p141, %p142
      %p145 = scmp.ne.s32.totalorder %s128, %s144
      %p146 = scmp.eq.s32.totalorder %s26, 0
      %p147 = por %p145, %p146
      %p148 = scmp.le.s32.totalorder 1, %s20
      %p149 = scmp.lt.s32.totalorder %s20, 3
      %p150 = pnand %p148, %p149
      %p151 = pneg %p150
      // Predicated region
      $region9: #{single_head_attention.1} parent=5 // pred_check
        _
      $region10: #{single_head_attention.1} parent=5 // pred_check_branch
        %153 = sbr.rel (%p150) target = $region12
      $region11: #{single_head_attention.1} parent=5 // pred_region
        %s154 = ssub.s32 %s20, 1
        // Predicated region
        $region13: #{single_head_attention.1} parent=11 // pred_check
          %p155 = pneg %p93
        $region14: #{single_head_attention.1} parent=11 // pred_check_branch
          %157 = sbr.rel (%p155) target = $region16
        $region15: #{single_head_attention.1} parent=11 // pred_region
          %159 = vsyncadd [#allocation6], 0
          %s160 = sshll.u32 %s2, 4
          %s161 = int_to_ptr.hbm [resolvable:$true] %s160
          %s162 = sshll.u32 [#allocation7], 4
          %s163 = int_to_ptr.vmem [resolvable:$true] %s162
          %168 = dma.hbm_to_vmem [thread:$0]  %s161, 512, %s163, [#allocation6], 128, 128, 8
        $region16: #{single_head_attention.1} parent=11 // pred_fallthru
          _
        // Predicated region
        $region17: #{single_head_attention.1} parent=11 // pred_check
          %p169 = pneg %p114
        $region18: #{single_head_attention.1} parent=11 // pred_check_branch
          %171 = sbr.rel (%p169) target = $region20
        $region19: #{single_head_attention.1} parent=11 // pred_region
          %173 = vsyncadd [#allocation9], 0
          %s174 = sshll.u32 %s3, 4
          %s175 = int_to_ptr.hbm [resolvable:$true] %s174
          %s176 = sshll.u32 [#allocation8], 4
          %s177 = int_to_ptr.vmem [resolvable:$true] %s176
          %182 = dma.hbm_to_vmem [thread:$0]  %s175, 512, %s177, [#allocation9], 128, 128, 8
        $region20: #{single_head_attention.1} parent=11 // pred_fallthru
          _
      $region12: #{single_head_attention.1} parent=5 // pred_fallthru
        _
      %p183 = scmp.lt.s32.totalorder %s20, 2
      // Predicated region
      $region21: #{single_head_attention.1} parent=5 // pred_check
        %p184 = pneg %p183
      $region22: #{single_head_attention.1} parent=5 // pred_check_branch
        %186 = sbr.rel (%p184) target = $region24
      $region23: #{single_head_attention.1} parent=5 // pred_region
        // Predicated region
        $region25: #{single_head_attention.1} parent=23 // pred_check
          %p187 = pneg %p40
        $region26: #{single_head_attention.1} parent=23 // pred_check_branch
          %189 = sbr.rel (%p187) target = $region28
        $region27: #{single_head_attention.1} parent=23 // pred_region
          %s190 = sand.u32 %s30, 1
          %s191 = scalar_lea.sflag [#allocation3], %s190
          %s192 = sand.u32 %s30, 1
          %s193 = smul.addr %s192, 32
          %s194 = scalar_lea.vmem [#allocation2], %s193
          %s195 = smul.u32 4, %s20
          %197 = vsyncadd %s191, 0
          %s198 = smul.addr %s195, 8
          %s199 = scalar_lea.hbm %s0, %s198
          %s200 = sshll.u32 %s199, 4
          %s201 = int_to_ptr.hbm [resolvable:$true] %s200
          %s202 = sshll.u32 %s194, 4
          %s203 = int_to_ptr.vmem [resolvable:$true] %s202
          %208 = dma.hbm_to_vmem [thread:$0]  %s201, 512, %s203, %s191, 128, 128, 8
        $region28: #{single_head_attention.1} parent=23 // pred_fallthru
          _
        // Predicated region
        $region29: #{single_head_attention.1} parent=23 // pred_check
          %p209 = pneg %p66
        $region30: #{single_head_attention.1} parent=23 // pred_check_branch
          %211 = sbr.rel (%p209) target = $region32
        $region31: #{single_head_attention.1} parent=23 // pred_region
          %s212 = sand.u32 %s20, 1
          %s213 = scalar_lea.sflag [#allocation6], %s212
          %s214 = sand.u32 %s56, 1
          %s215 = smul.addr %s214, 32
          %s216 = scalar_lea.vmem [#allocation5], %s215
          %s217 = smul.u32 4, %s20
          %219 = vsyncadd %s213, 0
          %s220 = smul.addr %s217, 8
          %s221 = scalar_lea.hbm %s1, %s220
          %s222 = sshll.u32 %s221, 4
          %s223 = int_to_ptr.hbm [resolvable:$true] %s222
          %s224 = sshll.u32 %s216, 4
          %s225 = int_to_ptr.vmem [resolvable:$true] %s224
          %230 = dma.hbm_to_vmem [thread:$0]  %s223, 512, %s225, %s213, 128, 128, 8
        $region32: #{single_head_attention.1} parent=23 // pred_fallthru
          _
      $region24: #{single_head_attention.1} parent=5 // pred_fallthru
        _
      %p231 = scmp.le.s32.totalorder 1, %s20
      %p232 = scmp.lt.s32.totalorder %s20, 3
      %p233 = pnand %p231, %p232
      %p234 = pneg %p233
      // Predicated region
      $region33: #{single_head_attention.1} parent=5 // pred_check
        _
      $region34: #{single_head_attention.1} parent=5 // pred_check_branch
        %236 = sbr.rel (%p233) target = $region36
      $region35: #{single_head_attention.1} parent=5 // pred_region
        %s237 = ssub.s32 %s20, 1
        %s238 = sand.u32 %s33, 1
        %s239 = scalar_lea.sflag [#allocation3], %s238
        %s240 = sand.u32 %s33, 1
        %s241 = smul.addr %s240, 32
        %s242 = scalar_lea.vmem [#allocation2], %s241
        // Predicated region
        $region37: #{single_head_attention.1} parent=35 // pred_check
          %p243 = pneg %p46
        $region38: #{single_head_attention.1} parent=35 // pred_check_branch
          %245 = sbr.rel (%p243) target = $region40
        $region39: #{single_head_attention.1} parent=35 // pred_region
          %247 = dma.done %s239, 512
        $region40: #{single_head_attention.1} parent=35 // pred_fallthru
          _
        %s248 = sand.u32 %s25, 1
        %s249 = scalar_lea.sflag [#allocation6], %s248
        %s250 = sand.u32 %s59, 1
        %s251 = smul.addr %s250, 32
        %s252 = scalar_lea.vmem [#allocation5], %s251
        // Predicated region
        $region41: #{single_head_attention.1} parent=35 // pred_check
          %p253 = pneg %p72
        $region42: #{single_head_attention.1} parent=35 // pred_check_branch
          %255 = sbr.rel (%p253) target = $region44
        $region43: #{single_head_attention.1} parent=35 // pred_region
          %257 = dma.done %s249, 512
        $region44: #{single_head_attention.1} parent=35 // pred_fallthru
          _
        // Predicated region
        $region45: #{single_head_attention.1} parent=35 // pred_check
          %p258 = pneg %p93
        $region46: #{single_head_attention.1} parent=35 // pred_check_branch
          %260 = sbr.rel (%p258) target = $region48
        $region47: #{single_head_attention.1} parent=35 // pred_region
          %262 = dma.done [#allocation6], 512
        $region48: #{single_head_attention.1} parent=35 // pred_fallthru
          _
        // Predicated region
        $region49: #{single_head_attention.1} parent=35 // pred_check
          %p263 = pneg %p114
        $region50: #{single_head_attention.1} parent=35 // pred_check_branch
          %265 = sbr.rel (%p263) target = $region52
        $region51: #{single_head_attention.1} parent=35 // pred_region
          %267 = dma.done [#allocation9], 512
        $region52: #{single_head_attention.1} parent=35 // pred_fallthru
          _
        %s268 = sand.u32 %s33, 1
        %s269 = scalar_lea.sflag [#allocation3], %s268
        %s270 = sand.u32 %s33, 1
        %s271 = smul.addr %s270, 32
        %s272 = scalar_lea.vmem [#allocation2], %s271
        %p273 = pneg %p46
        %p274 = pneg %p43
        %s275 = sand.u32 %s25, 1
        %s276 = scalar_lea.sflag [#allocation6], %s275
        %s277 = sand.u32 %s59, 1
        %s278 = smul.addr %s277, 32
        %s279 = scalar_lea.vmem [#allocation5], %s278
        %p280 = pneg %p72
        %p281 = pneg %p69
        %p282 = pneg %p93
        %p283 = pneg %p90
        %p284 = pneg %p114
        %p285 = pneg %p111
        %p286 = pneg %p140
        %p287 = pneg %p137
        %s288 = sand.u32 %s127, 1
        %s289 = scalar_lea.sflag [#allocation4], %s288
        %s290 = sand.u32 %s127, 1
        %s291 = smul.addr %s290, 32
        %s292 = scalar_lea.vmem [#allocation10], %s291
        %s293 = smul.u32 4, %s25
        %s294 = smul.u32 4, %s25
        %s295 = smul.u32 4, %s25
        %v296 = vld [vmem:[%s242] sm:$0xff]
        %v297 = vld [vmem:[%s242 + $0x8] sm:$0xff]
        %v298 = vld [vmem:[%s242 + $0x10] sm:$0xff]
        %v299 = vld [vmem:[%s242 + $0x18] sm:$0xff]
        %v300 = vld [vmem:[%s252] sm:$0xff]
        %v301 = vld [vmem:[%s252 + $0x8] sm:$0xff]
        %v302 = vld [vmem:[%s252 + $0x10] sm:$0xff]
        %v303 = vld [vmem:[%s252 + $0x18] sm:$0xff]
        %v304 = vld [vmem:[#allocation7] sm:$0xff]
        %v305 = vld [vmem:[#allocation7 + $0x8] sm:$0xff]
        %v306 = vld [vmem:[#allocation7 + $0x10] sm:$0xff]
        %v307 = vld [vmem:[#allocation7 + $0x18] sm:$0xff]
        %vm308 = vcmask 261120
        %v310 = vsel %vm308, %v296, 0
        %v313 = vsel %vm308, %v297, 0
        %v316 = vsel %vm308, %v298, 0
        %v319 = vsel %vm308, %v299, 0
        %321 = vmatpush.msra.mxu0 0.0
        %322 = vmatpush.msra.mxu0 0.0
        %323 = vmatpush.msra.mxu0 0.0
        %324 = vmatpush.msra.mxu0 0.0
        %325 = vmatpush.msra.mxu0 0.0
        %326 = vmatpush.msra.mxu0 0.0
        %327 = vmatpush.msra.mxu0 0.0
        %328 = vmatpush.msra.mxu0 0.0
        %329 = vmatpush.msra.mxu0 0.0
        %330 = vmatpush.msra.mxu0 0.0
        %331 = vmatpush.msra.mxu0 0.0
        %332 = vmatpush.msra.mxu0 0.0
        %333 = vmatpush.msra.mxu0 %v307
        %334 = vmatpush.msra.mxu0 %v306
        %335 = vmatpush.msra.mxu0 %v305
        %336 = vmatpush.msra.mxu0 %v304
        %337 = vmatmul.f32.gmra.mxu0 %v310
        %v338 = vpop.f32.mrf.mxu0
        %v339 = vadd.f32 0.0, %v338
        %340 = vmatmul.f32.gmra.mxu0 %v313
        %v341 = vpop.f32.mrf.mxu0
        %v342 = vadd.f32 0.0, %v341
        %343 = vmatmul.f32.gmra.mxu0 %v316
        %v344 = vpop.f32.mrf.mxu0
        %v345 = vadd.f32 0.0, %v344
        %346 = vmatmul.f32.gmra.mxu0 %v319
        %v347 = vpop.f32.mrf.mxu0
        %v348 = vadd.f32 0.0, %v347
        %349 = vdwg.mxu0
        %v350 = vld [vmem:[#allocation8] sm:$0xff]
        %v351 = vld [vmem:[#allocation8 + $0x8] sm:$0xff]
        %v352 = vld [vmem:[#allocation8 + $0x10] sm:$0xff]
        %v353 = vld [vmem:[#allocation8 + $0x18] sm:$0xff]
        %v355 = vsel %vm308, %v300, 0
        %v358 = vsel %vm308, %v301, 0
        %v361 = vsel %vm308, %v302, 0
        %v364 = vsel %vm308, %v303, 0
        %366 = vmatpush.msra.mxu0 0.0
        %367 = vmatpush.msra.mxu0 0.0
        %368 = vmatpush.msra.mxu0 0.0
        %369 = vmatpush.msra.mxu0 0.0
        %370 = vmatpush.msra.mxu0 0.0
        %371 = vmatpush.msra.mxu0 0.0
        %372 = vmatpush.msra.mxu0 0.0
        %373 = vmatpush.msra.mxu0 0.0
        %374 = vmatpush.msra.mxu0 0.0
        %375 = vmatpush.msra.mxu0 0.0
        %376 = vmatpush.msra.mxu0 0.0
        %377 = vmatpush.msra.mxu0 0.0
        %378 = vmatpush.msra.mxu0 %v353
        %379 = vmatpush.msra.mxu0 %v352
        %380 = vmatpush.msra.mxu0 %v351
        %381 = vmatpush.msra.mxu0 %v350
        %382 = vmatmul.f32.gmra.mxu0 %v355
        %v383 = vpop.f32.mrf.mxu0
        %v384 = vadd.f32 0.0, %v383
        %385 = vmatmul.f32.gmra.mxu0 %v358
        %v386 = vpop.f32.mrf.mxu0
        %v387 = vadd.f32 0.0, %v386
        %388 = vmatmul.f32.gmra.mxu0 %v361
        %v389 = vpop.f32.mrf.mxu0
        %v390 = vadd.f32 0.0, %v389
        %391 = vmatmul.f32.gmra.mxu0 %v364
        %v392 = vpop.f32.mrf.mxu0
        %v393 = vadd.f32 0.0, %v392
        %394 = vdwg.mxu0
        %v396 = vsel %vm308, %v339, 0
        %v399 = vsel %vm308, %v384, 0
        %401 = vmatpush.xpose.msra.mxu0 0.0
        %402 = vmatpush.xpose.msra.mxu0 0.0
        %403 = vmatpush.xpose.msra.mxu0 0.0
        %404 = vmatpush.xpose.msra.mxu0 0.0
        %405 = vmatpush.xpose.msra.mxu0 0.0
        %406 = vmatpush.xpose.msra.mxu0 0.0
        %407 = vmatpush.xpose.msra.mxu0 0.0
        %408 = vmatpush.xpose.msra.mxu0 0.0
        %409 = vmatpush.xpose.msra.mxu0 0.0
        %410 = vmatpush.xpose.msra.mxu0 0.0
        %411 = vmatpush.xpose.msra.mxu0 0.0
        %412 = vmatpush.xpose.msra.mxu0 0.0
        %413 = vmatpush.xpose.msra.mxu0 0.0
        %414 = vmatpush.xpose.msra.mxu0 0.0
        %415 = vmatpush.xpose.msra.mxu0 0.0
        %416 = vmatpush.xpose.msra.mxu0 %v399
        %417 = vmatmul.f32.gmra.mxu0 %v396
        %v418 = vpop.f32.mrf.mxu0
        %v419 = vadd.f32 0.0, %v418
        %420 = vdwg.mxu0
        %v422 = vsel %vm308, %v342, 0
        %v425 = vsel %vm308, %v387, 0
        %427 = vmatpush.xpose.msra.mxu0 0.0
        %428 = vmatpush.xpose.msra.mxu0 0.0
        %429 = vmatpush.xpose.msra.mxu0 0.0
        %430 = vmatpush.xpose.msra.mxu0 0.0
        %431 = vmatpush.xpose.msra.mxu0 0.0
        %432 = vmatpush.xpose.msra.mxu0 0.0
        %433 = vmatpush.xpose.msra.mxu0 0.0
        %434 = vmatpush.xpose.msra.mxu0 0.0
        %435 = vmatpush.xpose.msra.mxu0 0.0
        %436 = vmatpush.xpose.msra.mxu0 0.0
        %437 = vmatpush.xpose.msra.mxu0 0.0
        %438 = vmatpush.xpose.msra.mxu0 0.0
        %439 = vmatpush.xpose.msra.mxu0 0.0
        %440 = vmatpush.xpose.msra.mxu0 0.0
        %441 = vmatpush.xpose.msra.mxu0 0.0
        %442 = vmatpush.xpose.msra.mxu0 %v425
        %443 = vmatmul.f32.gmra.mxu0 %v422
        %v444 = vpop.f32.mrf.mxu0
        %v445 = vadd.f32 0.0, %v444
        %446 = vdwg.mxu0
        %v448 = vsel %vm308, %v345, 0
        %v451 = vsel %vm308, %v390, 0
        %453 = vmatpush.xpose.msra.mxu0 0.0
        %454 = vmatpush.xpose.msra.mxu0 0.0
        %455 = vmatpush.xpose.msra.mxu0 0.0
        %456 = vmatpush.xpose.msra.mxu0 0.0
        %457 = vmatpush.xpose.msra.mxu0 0.0
        %458 = vmatpush.xpose.msra.mxu0 0.0
        %459 = vmatpush.xpose.msra.mxu0 0.0
        %460 = vmatpush.xpose.msra.mxu0 0.0
        %461 = vmatpush.xpose.msra.mxu0 0.0
        %462 = vmatpush.xpose.msra.mxu0 0.0
        %463 = vmatpush.xpose.msra.mxu0 0.0
        %464 = vmatpush.xpose.msra.mxu0 0.0
        %465 = vmatpush.xpose.msra.mxu0 0.0
        %466 = vmatpush.xpose.msra.mxu0 0.0
        %467 = vmatpush.xpose.msra.mxu0 0.0
        %468 = vmatpush.xpose.msra.mxu0 %v451
        %469 = vmatmul.f32.gmra.mxu0 %v448
        %v470 = vpop.f32.mrf.mxu0
        %v471 = vadd.f32 0.0, %v470
        %472 = vdwg.mxu0
        %v474 = vsel %vm308, %v348, 0
        %v477 = vsel %vm308, %v393, 0
        %479 = vmatpush.xpose.msra.mxu0 0.0
        %480 = vmatpush.xpose.msra.mxu0 0.0
        %481 = vmatpush.xpose.msra.mxu0 0.0
        %482 = vmatpush.xpose.msra.mxu0 0.0
        %483 = vmatpush.xpose.msra.mxu0 0.0
        %484 = vmatpush.xpose.msra.mxu0 0.0
        %485 = vmatpush.xpose.msra.mxu0 0.0
        %486 = vmatpush.xpose.msra.mxu0 0.0
        %487 = vmatpush.xpose.msra.mxu0 0.0
        %488 = vmatpush.xpose.msra.mxu0 0.0
        %489 = vmatpush.xpose.msra.mxu0 0.0
        %490 = vmatpush.xpose.msra.mxu0 0.0
        %491 = vmatpush.xpose.msra.mxu0 0.0
        %492 = vmatpush.xpose.msra.mxu0 0.0
        %493 = vmatpush.xpose.msra.mxu0 0.0
        %494 = vmatpush.xpose.msra.mxu0 %v477
        %495 = vmatmul.f32.gmra.mxu0 %v474
        %v496 = vpop.f32.mrf.mxu0
        %v497 = vadd.f32 0.0, %v496
        %498 = vdwg.mxu0
        %v499 = vmul.f32 %v419, 0.17677669
        %v500 = vmul.f32 %v445, 0.17677669
        %v501 = vmul.f32 %v471, 0.17677669
        %v502 = vmul.f32 %v497, 0.17677669
        %v503 = vtanh.pop %v499
        %v504 = vtanh.pop %v500
        %v505 = vtanh.pop %v501
        %v506 = vtanh.pop %v502
        %v507 = vmul.f32 %v503, 10.0
        %v508 = vmul.f32 %v504, 10.0
        %v509 = vmul.f32 %v505, 10.0
        %v510 = vmul.f32 %v506, 10.0
        %vm511 = vcmask 64512
        %v512 = vsel %vm511, %v507, -inf
        %v513 = vsel %vm511, %v508, -inf
        %v514 = vsel %vm511, %v509, -inf
        %v515 = vsel %vm511, %v510, -inf
        %516 = vmax.xlane.f32.xlu0 %v512
        %v517 = vpop.xlane.xlu0 %516
        %518 = vmax.xlane.f32.xlu0 %v513
        %v519 = vpop.xlane.xlu0 %518
        %520 = vmax.xlane.f32.xlu0 %v514
        %v521 = vpop.xlane.xlu0 %520
        %522 = vmax.xlane.f32.xlu0 %v515
        %v523 = vpop.xlane.xlu0 %522
        %v524 = vsub.f32 %v512, %v517
        %v525 = vsub.f32 %v513, %v519
        %v526 = vsub.f32 %v514, %v521
        %v527 = vsub.f32 %v515, %v523
        %v528 = vmul.f32 %v524, 1.442695
        %v529 = vpow.pop %v528
        %v530 = vmul.f32 %v525, 1.442695
        %v531 = vpow.pop %v530
        %v532 = vmul.f32 %v526, 1.442695
        %v533 = vpow.pop %v532
        %v534 = vmul.f32 %v527, 1.442695
        %v535 = vpow.pop %v534
        %536 = vadd.xlane.f32.xlu0 %v529
        %v537 = vpop.xlane.xlu0 %536
        %538 = vadd.xlane.f32.xlu0 %v531
        %v539 = vpop.xlane.xlu0 %538
        %540 = vadd.xlane.f32.xlu0 %v533
        %v541 = vpop.xlane.xlu0 %540
        %542 = vadd.xlane.f32.xlu0 %v535
        %v543 = vpop.xlane.xlu0 %542
        %v544 = vlog2.pop %v537
        %v545 = vmul.f32 %v544, 0.6931472
        %v546 = vlog2.pop %v539
        %v547 = vmul.f32 %v546, 0.6931472
        %v548 = vlog2.pop %v541
        %v549 = vmul.f32 %v548, 0.6931472
        %v550 = vlog2.pop %v543
        %v551 = vmul.f32 %v550, 0.6931472
        %v552 = vadd.f32 %v545, %v517
        %v553 = vadd.f32 %v547, %v519
        %v554 = vadd.f32 %v549, %v521
        %v555 = vadd.f32 %v551, %v523
        %v556 = vsub.f32 %v512, %v552
        %v557 = vsub.f32 %v513, %v553
        %v558 = vsub.f32 %v514, %v554
        %v559 = vsub.f32 %v515, %v555
        %560 = vst [vmem:[%s292] sm:$0xff] %v556
        %561 = vst [vmem:[%s292 + $0x8] sm:$0xff] %v557
        %562 = vst [vmem:[%s292 + $0x10] sm:$0xff] %v558
        %563 = vst [vmem:[%s292 + $0x18] sm:$0xff] %v559
        %s564 = sand.u32 %s127, 1
        %s565 = scalar_lea.sflag [#allocation4], %s564
        %s566 = sand.u32 %s127, 1
        %s567 = smul.addr %s566, 32
        %s568 = scalar_lea.vmem [#allocation10], %s567
        // Predicated region
        $region53: #{single_head_attention.1} parent=35 // pred_check
          %p569 = pneg %p137
        $region54: #{single_head_attention.1} parent=35 // pred_check_branch
          %571 = sbr.rel (%p569) target = $region56
        $region55: #{single_head_attention.1} parent=35 // pred_region
          %s572 = smul.u32 4, %s25
          %574 = vsyncadd %s565, 0
          %s575 = smul.addr %s572, 8
          %s576 = scalar_lea.hbm %s4, %s575
          %s577 = sshll.u32 %s568, 4
          %s578 = int_to_ptr.vmem [resolvable:$true] %s577
          %s579 = sshll.u32 %s576, 4
          %s580 = int_to_ptr.hbm [resolvable:$true] %s579
          %585 = dma.vmem_to_hbm [thread:$0]  %s578, 512, %s580, %s565, 128, 128, 8
        $region56: #{single_head_attention.1} parent=35 // pred_fallthru
          _
      $region36: #{single_head_attention.1} parent=5 // pred_fallthru
        _
      %p586 = scmp.le.s32.totalorder 2, %s20
      // Predicated region
      $region57: #{single_head_attention.1} parent=5 // pred_check
        %p587 = pneg %p586
      $region58: #{single_head_attention.1} parent=5 // pred_check_branch
        %589 = sbr.rel (%p587) target = $region60
      $region59: #{single_head_attention.1} parent=5 // pred_region
        %s590 = ssub.s32 %s20, 2
        // Predicated region
        $region61: #{single_head_attention.1} parent=59 // pred_check
          %p591 = pneg %p143
        $region62: #{single_head_attention.1} parent=59 // pred_check_branch
          %593 = sbr.rel (%p591) target = $region64
        $region63: #{single_head_attention.1} parent=59 // pred_region
          %s594 = sand.u32 %s128, 1
          %s595 = scalar_lea.sflag [#allocation4], %s594
          %s596 = sand.u32 %s128, 1
          %s597 = smul.addr %s596, 32
          %s598 = scalar_lea.vmem [#allocation10], %s597
          %600 = dma.done %s595, 512
        $region64: #{single_head_attention.1} parent=59 // pred_fallthru
          _
      $region60: #{single_head_attention.1} parent=5 // pred_fallthru
        _
    $region6: #{single_head_attention.1} parent=1 // loop_footer
      %s24 = sadd.s32 1, %s20
    $region7: #{single_head_attention.1} parent=1 // loop_footer_branch
      %19 = sbr.rel target = $region3
    $region8: #{single_head_attention.1} parent=1 // loop_exit
      _
    %601 = vsyncpa [#allocation3], 1
    %s602 = scalar_lea.sflag [#allocation3], 1
    %603 = vsyncpa %s602, 1
    %604 = vsyncpa [#allocation6], 1
    %s605 = scalar_lea.sflag [#allocation6], 1
    %606 = vsyncpa %s605, 1
    %607 = vsyncpa [#allocation9], 1
    %608 = vsyncpa [#allocation4], 1
    %s609 = scalar_lea.sflag [#allocation4], 1
    %610 = vsyncpa %s609, 1

</llo_original>
